<compile_context>
chip_gen: v5e
topology: v5e:2x2
jax: 0.10.0
libtpu: 0.0.40
codegen_flags: <defaults>
</compile_context>

<pallas_src>
import jax
import jax.numpy as jnp
from jax import lax
from jax.experimental import pallas as pl
from jax.experimental.pallas import tpu as pltpu


def _round_up(x: int, m: int) -> int:
    return ((x + m - 1) // m) * m


def _translation_kernel(idx_ref, x_ref, t_ref, o_ref):
    # idx_ref: (tile, 1) int32 ; x_ref / o_ref: (tile, dim) ; t_ref: (num_ops_p, dim)
    tile = x_ref.shape[0]
    num_ops = t_ref.shape[0]

    idx = idx_ref[...]                                           # (tile, 1) int32
    # One-hot gather of each row's translation via the MXU (free slot here).
    op_iota = lax.broadcasted_iota(jnp.int32, (tile, num_ops), 1)
    onehot = (op_iota == idx).astype(jnp.float32)                # (tile, num_ops)
    # precision=HIGHEST: the one-hot is exact in bf16, so the gathered rows are
    # bit-exact f32 copies of the table (default precision would round ~2^-9).
    gathered = jnp.dot(onehot, t_ref[...].astype(jnp.float32),
                       preferred_element_type=jnp.float32,
                       precision=lax.Precision.HIGHEST)          # (tile, dim) f32

    # Compute in f32; cast only at the full-width (lane-dense, unmasked) store.
    o_ref[...] = (x_ref[...].astype(jnp.float32) + gathered).astype(o_ref.dtype)


def translation_dynamic_operator(embeddings, operator_idxs, translations, *, row_tile=None):
    """out = embeddings + translations[operator_idxs] (fused gather + add on TPU)."""
    dim = embeddings.shape[-1]
    num_ops, t_dim = translations.shape
    assert t_dim == dim, "translations must be (num_operations, dim)"
    lead = embeddings.shape[:-1]
    assert tuple(operator_idxs.shape) == tuple(lead), (operator_idxs.shape, lead)

    x2d = embeddings.reshape(-1, dim)
    n_rows = x2d.shape[0]
    idx2d = operator_idxs.reshape(-1, 1).astype(jnp.int32)

    # Pad the table's op axis to a multiple of 8 sublanes (zero rows are never
    # selected, since valid indices are < num_ops).
    num_ops_p = _round_up(num_ops, 8)
    if num_ops_p != num_ops:
        translations = jnp.pad(translations, ((0, num_ops_p - num_ops), (0, 0)))

    x_esize = jnp.dtype(embeddings.dtype).itemsize
    t_esize = jnp.dtype(translations.dtype).itemsize

    # --- Generation-aware VMEM budget (v5e/v6e: 128 MiB, v7x: 64 MiB per TC). ---
    vmem_cap = 64 * 1024 * 1024          # conservative fallback works on every generation
    try:
        cap = getattr(pltpu.get_tpu_info(), "vmem_capacity_bytes", None)
        if cap:
            vmem_cap = int(cap)
    except Exception:
        pass
    # ~75% of physical VMEM: 96 MiB on 128 MiB parts, 48 MiB on 64 MiB parts.
    vmem_limit = min((vmem_cap // 4) * 3, 112 * 1024 * 1024)

    # Fixed VMEM costs: translation table is double-buffered despite the
    # constant index_map, plus headroom for Mosaic-internal scratch.
    # TODO(synk): if num_operations * dim grows to several MiB, chunk the table
    # over an extra grid axis (pl.when-guarded accumulation) or use a manual
    # DMA gather instead of keeping it fully VMEM-resident.
    table_bytes = num_ops_p * _round_up(dim, 128) * t_esize
    fixed_bytes = 2 * table_bytes + 2 * 1024 * 1024
    io_budget = max(vmem_limit - fixed_bytes, 4 * 1024 * 1024)

    # Per-row VMEM cost: double-buffered in/out embedding blocks, the
    # lane-padded (tile, 1) int32 index blocks (padded to 128 lanes in VMEM),
    # and f32 one-hot / intermediate scratch.
    per_row_bytes = (2 * dim * x_esize                  # embedding input, x2 buffers
                     + 2 * dim * x_esize                # output, x2 buffers
                     + 2 * 128 * 4                      # (tile,1) idx -> (tile,128) i32, x2 buffers
                     + _round_up(num_ops_p, 128) * 4    # f32 one-hot temporary
                     + 2 * dim * 4)                     # f32 gathered / sum intermediates
    max_tile = max(8, (io_budget // per_row_bytes) // 8 * 8)

    # Target multi-MiB embedding blocks so per-grid-step overhead (~0.35 us) is
    # amortized against DMA time; sized with the actual input dtype itemsize.
    target_block_bytes = 4 * 1024 * 1024
    if row_tile is None:
        row_tile = max(512, target_block_bytes // max(dim * x_esize, 1))
    tile = min(_round_up(row_tile, 8), max_tile)
    # Keep >= ~4 grid blocks so both v7x TensorCores get work and the pipeline
    # has steps to overlap (never below the 8-row sublane granule).
    tile = min(tile, max(8, _round_up(pl.cdiv(n_rows, 4), 8)))
    tile = max(8, min(tile, _round_up(n_rows, 8)))
    grid = (pl.cdiv(n_rows, tile),)      # no row padding: tail block is masked

    out2d = pl.pallas_call(
        _translation_kernel,
        out_shape=jax.ShapeDtypeStruct((n_rows, dim), embeddings.dtype),
        grid_spec=pltpu.PrefetchScalarGridSpec(
            num_scalar_prefetch=0,
            grid=grid,
            in_specs=[
                pl.BlockSpec((tile, 1), lambda i: (i, 0)),           # operator indices
                pl.BlockSpec((tile, dim), lambda i: (i, 0)),         # embedding rows
                pl.BlockSpec((num_ops_p, dim), lambda i: (0, 0)),    # full table, VMEM-resident
            ],
            out_specs=pl.BlockSpec((tile, dim), lambda i: (i, 0)),
        ),
        compiler_params=pltpu.CompilerParams(
            dimension_semantics=("parallel",),   # shard rows across TCs (v7x megacore)
            vmem_limit_bytes=int(vmem_limit),
        ),
    )(idx2d, x2d, translations)

    return out2d.reshape(*lead, dim)


if __name__ == "__main__":
    key = jax.random.PRNGKey(0)
    dim = 128          # lane-dense last dim (multiple of 128)
    num_ops = 10

    k_emb, k_idx, k_t = jax.random.split(key, 3)
    embeddings = jax.random.normal(k_emb, (2, 4, dim), jnp.float32)
    operator_idxs = jax.random.randint(k_idx, (2, 4), 0, num_ops, dtype=jnp.int32)
    # nn.Parameter init is zeros; perturb deterministically so the check is non-trivial.
    translations = 0.1 * jax.random.normal(k_t, (num_ops, dim), jnp.float32)

    out = translation_dynamic_operator(embeddings, operator_idxs, translations)
    out = jax.block_until_ready(out)

    # Pure-JAX reference check (tolerance covers any residual matmul-pass rounding).
    ref = embeddings + translations[operator_idxs]
    assert out.shape == embeddings.shape
    assert jnp.allclose(out, ref, atol=5e-4, rtol=1e-4), float(jnp.max(jnp.abs(out - ref)))

    print("KERNEL_OK")
</pallas_src>

<mosaic_0001>
module attributes {stable_mosaic.version = 11 : i64} {
  func.func @_translation_kernel(%arg0: i32, %arg1: memref<8x1xi32, #tpu.memory_space<vmem>>, %arg2: memref<8x128xf32, #tpu.memory_space<vmem>>, %arg3: memref<16x128xf32, #tpu.memory_space<vmem>>, %arg4: memref<8x128xf32, #tpu.memory_space<vmem>>) attributes {dimension_semantics = [#tpu.dimension_semantics<parallel>], iteration_bounds = array<i64: 1>, scalar_prefetch = 0 : i64, scratch_operands = 0 : i64, tpu.core_type = #tpu.core_type<tc>, window_params = [{transform_indices = @transform_0, window_bounds = array<i64: 8, 1>}, {transform_indices = @transform_1, window_bounds = array<i64: 8, 128>}, {pipeline_mode = #tpu.pipeline_mode<synchronous>, transform_indices = @transform_2, window_bounds = array<i64: 16, 128>}, {transform_indices = @transform_3, window_bounds = array<i64: 8, 128>}]} {
    %c0 = arith.constant 0 : index
    %c0_0 = arith.constant 0 : index
    %0 = vector.load %arg1[%c0, %c0_0] : memref<8x1xi32, #tpu.memory_space<vmem>>, vector<8x1xi32>
    %1 = tpu.iota {dimensions = array<i32: 1>} : vector<8x16xi32>
    %2 = vector.broadcast %0 : vector<8x1xi32> to vector<8x16xi32>
    %3 = arith.cmpi eq, %1, %2 : vector<8x16xi32>
    %4 = arith.extui %3 : vector<8x16xi1> to vector<8x16xi32>
    %5 = arith.sitofp %4 : vector<8x16xi32> to vector<8x16xf32>
    %c0_1 = arith.constant 0 : index
    %c0_2 = arith.constant 0 : index
    %6 = vector.load %arg3[%c0_1, %c0_2] : memref<16x128xf32, #tpu.memory_space<vmem>>, vector<16x128xf32>
    %cst = arith.constant dense<0.000000e+00> : vector<8x128xf32>
    %7 = tpu.matmul %5, %6, %cst {dimension_numbers = #tpu.dot_dimension_numbers<[1], [0], [0], [1], [0, 0, 1, 1], [], []>, precision = #tpu.contract_precision<fp32>} : vector<8x16xf32>, vector<16x128xf32>, vector<8x128xf32> -> vector<8x128xf32>
    %c0_3 = arith.constant 0 : index
    %c0_4 = arith.constant 0 : index
    %8 = vector.load %arg2[%c0_3, %c0_4] : memref<8x128xf32, #tpu.memory_space<vmem>>, vector<8x128xf32>
    %9 = arith.addf %8, %7 : vector<8x128xf32>
    %c0_5 = arith.constant 0 : index
    %c0_6 = arith.constant 0 : index
    %10 = vector.load %arg4[%c0_5, %c0_6] : memref<8x128xf32, #tpu.memory_space<vmem>>, vector<8x128xf32>
    tpu.vector_store %arg4[%c0_5, %c0_6], %9 {strides = array<i32>} : memref<8x128xf32, #tpu.memory_space<vmem>>, vector<8x128xf32>,
    return
  }
  func.func @transform_0(%arg0: i32) -> (i32, i32) {
    %c0_i32 = arith.constant 0 : i32
    %c0_i32_0 = arith.constant 0 : i32
    return %arg0, %c0_i32 : i32, i32
  }
  func.func @transform_1(%arg0: i32) -> (i32, i32) {
    %c0_i32 = arith.constant 0 : i32
    %c0_i32_0 = arith.constant 0 : i32
    return %arg0, %c0_i32 : i32, i32
  }
  func.func @transform_2(%arg0: i32) -> (i32, i32) {
    %c0_i32 = arith.constant 0 : i32
    %c0_i32_0 = arith.constant 0 : i32
    %c0_i32_1 = arith.constant 0 : i32
    return %c0_i32, %c0_i32_0 : i32, i32
  }
  func.func @transform_3(%arg0: i32) -> (i32, i32) {
    %c0_i32 = arith.constant 0 : i32
    %c0_i32_0 = arith.constant 0 : i32
    return %arg0, %c0_i32 : i32, i32
  }
}

</mosaic_0001>

<llo_original>
// kernel: tpu_custom_call.1
$region0: #{tpu_custom_call.1}
  #allocation0 [shape = 'u32[]', space=smem, size = 0x4, offset = 0x4, fixed_abs, tag = 'smem constant byte address 0x4 - core index']
  #allocation1 [shape = 'u32[72,128]{1,0:T(1,128)}', space=vmem, size = 0x9000, scoped, tag = 'internal scratch']
  %s0 = inlined_call_operand.vmem [shape: s32[8,1], index: 0, kind: input, shape index: {}]
  %s1 = inlined_call_operand.vmem [shape: f32[8,128], index: 1, kind: input, shape index: {}]
  %s2 = inlined_call_operand.hbm [shape: f32[16,128], index: 2, kind: input, shape index: {}]
  %s3 = inlined_call_operand.hbm [shape: f32[8,128], index: 3, kind: output, shape index: {}]
  %s4 = sld [smem:[#allocation0]]
  $region26: #{tpu_custom_call.1} parent=0
    _
  %s6 = ssub.s32 1, %s4
  %s7 = scalar_select 0, %s6, %s4
  $region1: #{tpu_custom_call.1} parent=0
    #allocation2 [shape = 'u8[8192]{0}', space=vmem, size = 0x2000, scoped, tag = 'input window, operand 2, single buffered']
    #allocation3 [shape = 's32[1]{0}', space=sflag, size = 0x4, scoped, tag = 'scoped memory for tpu_custom_call.1']
    #allocation4 [shape = 's32[1]{0}', space=sflag, size = 0x4, scoped, tag = 'scoped memory for tpu_custom_call.1']
    #allocation5 [shape = 'u8[4096]{0}', space=vmem, size = 0x1000, scoped, tag = 'output window, operand 0, single buffered']
    %8 = vsyncpa [#allocation3], 0
    %9 = vsyncpa [#allocation4], 0
    // Predicated region
    $region2: #{tpu_custom_call.1} parent=1 // pred_check
      _
    $region3: #{tpu_custom_call.1} parent=1 // pred_check_branch
      %11 = sbr.rel (0) target = $region5
    $region4: #{tpu_custom_call.1} parent=1 // pred_region
      _
    $region5: #{tpu_custom_call.1} parent=1 // pred_fallthru
      _
    // Predicated region
    $region6: #{tpu_custom_call.1} parent=1 // pred_check
      _
    $region7: #{tpu_custom_call.1} parent=1 // pred_check_branch
      %13 = sbr.rel (0) target = $region9
    $region8: #{tpu_custom_call.1} parent=1 // pred_region
      _
    $region9: #{tpu_custom_call.1} parent=1 // pred_fallthru
      _
    // Predicated region
    $region10: #{tpu_custom_call.1} parent=1 // pred_check
      _
    $region11: #{tpu_custom_call.1} parent=1 // pred_check_branch
      %15 = sbr.rel (0) target = $region13
    $region12: #{tpu_custom_call.1} parent=1 // pred_region
      %17 = vsyncadd [#allocation3], 0
      %s18 = sshll.u32 %s2, 4
      %s19 = int_to_ptr.hbm [resolvable:$true] %s18
      %s20 = sshll.u32 [#allocation2], 4
      %s21 = int_to_ptr.vmem [resolvable:$true] %s20
      %26 = dma.hbm_to_vmem [thread:$0]  %s19, 256, %s21, [#allocation3], 128, 128, 8
    $region13: #{tpu_custom_call.1} parent=1 // pred_fallthru
      _
    // Predicated region
    $region14: #{tpu_custom_call.1} parent=1 // pred_check
      _
    $region15: #{tpu_custom_call.1} parent=1 // pred_check_branch
      %28 = sbr.rel (0) target = $region17
    $region16: #{tpu_custom_call.1} parent=1 // pred_region
      %30 = dma.done [#allocation3], 256
    $region17: #{tpu_custom_call.1} parent=1 // pred_fallthru
      _
    %v31 = vld [vmem:[%s0] sm:$0xff]
    %v32 = vlaneseq
    %v33 = vand.u32 %v32, 127
    %34 = vset.pattern.permute.xlu0 0
    %35 = vperm.xlu0 %34, %v31
    %v36 = vpop.permute.xlu0 %35
    %vm37 = vcmp.eq.s32.totalorder %v33, %v36
    %v38 = vsel %vm37, 1, 0
    %v39 = vcvt.s32.f32 %v38
    %v40 = vld [vmem:[#allocation2] sm:$0xff]
    %v41 = vld [vmem:[#allocation2 + $0x8] sm:$0xff]
    %vm42 = vcmask 130048
    %v44 = vsel %vm42, %v39, 0
    %46 = vmatpush.msra.mxu0 0.0
    %47 = vmatpush.msra.mxu0 0.0
    %48 = vmatpush.msra.mxu0 0.0
    %49 = vmatpush.msra.mxu0 0.0
    %50 = vmatpush.msra.mxu0 0.0
    %51 = vmatpush.msra.mxu0 0.0
    %52 = vmatpush.msra.mxu0 0.0
    %53 = vmatpush.msra.mxu0 0.0
    %54 = vmatpush.msra.mxu0 0.0
    %55 = vmatpush.msra.mxu0 0.0
    %56 = vmatpush.msra.mxu0 0.0
    %57 = vmatpush.msra.mxu0 0.0
    %58 = vmatpush.msra.mxu0 0.0
    %59 = vmatpush.msra.mxu0 0.0
    %v60 = vand.u32 %v41, 4294901760
    %61 = vmatpush.msra.mxu0 %v60
    %v62 = vand.u32 %v40, 4294901760
    %63 = vmatpush.msra.mxu0 %v62
    %v64 = vand.u32 %v44, 4294901760
    %v65 = vsub.f32 %v44, %v64
    %v66 = vand.u32 %v65, 4294901760
    %v67 = vsub.f32 %v65, %v66
    %v68 = vand.u32 %v67, 4294901760
    %69 = vmatmul.f32.gmra.mxu0 %v68
    %v70 = vpop.f32.mrf.mxu0
    %v71 = vadd.f32 0.0, %v70
    %72 = vdwg.mxu0
    %73 = vmatpush.msra.mxu0 0.0
    %74 = vmatpush.msra.mxu0 0.0
    %75 = vmatpush.msra.mxu0 0.0
    %76 = vmatpush.msra.mxu0 0.0
    %77 = vmatpush.msra.mxu0 0.0
    %78 = vmatpush.msra.mxu0 0.0
    %79 = vmatpush.msra.mxu0 0.0
    %80 = vmatpush.msra.mxu0 0.0
    %81 = vmatpush.msra.mxu0 0.0
    %82 = vmatpush.msra.mxu0 0.0
    %83 = vmatpush.msra.mxu0 0.0
    %84 = vmatpush.msra.mxu0 0.0
    %85 = vmatpush.msra.mxu0 0.0
    %86 = vmatpush.msra.mxu0 0.0
    %v87 = vand.u32 %v41, 4294901760
    %v88 = vsub.f32 %v41, %v87
    %v89 = vand.u32 %v88, 4294901760
    %v90 = vsub.f32 %v88, %v89
    %v91 = vand.u32 %v90, 4294901760
    %92 = vmatpush.msra.mxu0 %v91
    %v93 = vand.u32 %v40, 4294901760
    %v94 = vsub.f32 %v40, %v93
    %v95 = vand.u32 %v94, 4294901760
    %v96 = vsub.f32 %v94, %v95
    %v97 = vand.u32 %v96, 4294901760
    %98 = vmatpush.msra.mxu0 %v97
    %v99 = vand.u32 %v44, 4294901760
    %100 = vmatmul.f32.gmra.mxu0 %v99
    %v101 = vpop.f32.mrf.mxu0
    %v102 = vadd.f32 %v71, %v101
    %103 = vdwg.mxu0
    %104 = vmatpush.msra.mxu0 0.0
    %105 = vmatpush.msra.mxu0 0.0
    %106 = vmatpush.msra.mxu0 0.0
    %107 = vmatpush.msra.mxu0 0.0
    %108 = vmatpush.msra.mxu0 0.0
    %109 = vmatpush.msra.mxu0 0.0
    %110 = vmatpush.msra.mxu0 0.0
    %111 = vmatpush.msra.mxu0 0.0
    %112 = vmatpush.msra.mxu0 0.0
    %113 = vmatpush.msra.mxu0 0.0
    %114 = vmatpush.msra.mxu0 0.0
    %115 = vmatpush.msra.mxu0 0.0
    %116 = vmatpush.msra.mxu0 0.0
    %117 = vmatpush.msra.mxu0 0.0
    %v118 = vand.u32 %v41, 4294901760
    %v119 = vsub.f32 %v41, %v118
    %120 = vmatpush.msra.mxu0 %v119
    %v121 = vand.u32 %v40, 4294901760
    %v122 = vsub.f32 %v40, %v121
    %123 = vmatpush.msra.mxu0 %v122
    %v124 = vand.u32 %v44, 4294901760
    %v125 = vsub.f32 %v44, %v124
    %126 = vmatmul.f32.gmra.mxu0 %v125
    %v127 = vpop.f32.mrf.mxu0
    %v128 = vadd.f32 %v102, %v127
    %129 = vdwg.mxu0
    %130 = vmatpush.msra.mxu0 0.0
    %131 = vmatpush.msra.mxu0 0.0
    %132 = vmatpush.msra.mxu0 0.0
    %133 = vmatpush.msra.mxu0 0.0
    %134 = vmatpush.msra.mxu0 0.0
    %135 = vmatpush.msra.mxu0 0.0
    %136 = vmatpush.msra.mxu0 0.0
    %137 = vmatpush.msra.mxu0 0.0
    %138 = vmatpush.msra.mxu0 0.0
    %139 = vmatpush.msra.mxu0 0.0
    %140 = vmatpush.msra.mxu0 0.0
    %141 = vmatpush.msra.mxu0 0.0
    %142 = vmatpush.msra.mxu0 0.0
    %143 = vmatpush.msra.mxu0 0.0
    %v144 = vand.u32 %v41, 4294901760
    %145 = vmatpush.msra.mxu0 %v144
    %v146 = vand.u32 %v40, 4294901760
    %147 = vmatpush.msra.mxu0 %v146
    %v148 = vand.u32 %v44, 4294901760
    %v149 = vsub.f32 %v44, %v148
    %v150 = vand.u32 %v149, 4294901760
    %151 = vmatmul.f32.gmra.mxu0 %v150
    %v152 = vpop.f32.mrf.mxu0
    %v153 = vadd.f32 %v128, %v152
    %154 = vdwg.mxu0
    %155 = vmatpush.msra.mxu0 0.0
    %156 = vmatpush.msra.mxu0 0.0
    %157 = vmatpush.msra.mxu0 0.0
    %158 = vmatpush.msra.mxu0 0.0
    %159 = vmatpush.msra.mxu0 0.0
    %160 = vmatpush.msra.mxu0 0.0
    %161 = vmatpush.msra.mxu0 0.0
    %162 = vmatpush.msra.mxu0 0.0
    %163 = vmatpush.msra.mxu0 0.0
    %164 = vmatpush.msra.mxu0 0.0
    %165 = vmatpush.msra.mxu0 0.0
    %166 = vmatpush.msra.mxu0 0.0
    %167 = vmatpush.msra.mxu0 0.0
    %168 = vmatpush.msra.mxu0 0.0
    %v169 = vand.u32 %v41, 4294901760
    %v170 = vsub.f32 %v41, %v169
    %v171 = vand.u32 %v170, 4294901760
    %172 = vmatpush.msra.mxu0 %v171
    %v173 = vand.u32 %v40, 4294901760
    %v174 = vsub.f32 %v40, %v173
    %v175 = vand.u32 %v174, 4294901760
    %176 = vmatpush.msra.mxu0 %v175
    %v177 = vand.u32 %v44, 4294901760
    %178 = vmatmul.f32.gmra.mxu0 %v177
    %v179 = vpop.f32.mrf.mxu0
    %v180 = vadd.f32 %v153, %v179
    %181 = vdwg.mxu0
    %182 = vmatpush.msra.mxu0 0.0
    %183 = vmatpush.msra.mxu0 0.0
    %184 = vmatpush.msra.mxu0 0.0
    %185 = vmatpush.msra.mxu0 0.0
    %186 = vmatpush.msra.mxu0 0.0
    %187 = vmatpush.msra.mxu0 0.0
    %188 = vmatpush.msra.mxu0 0.0
    %189 = vmatpush.msra.mxu0 0.0
    %190 = vmatpush.msra.mxu0 0.0
    %191 = vmatpush.msra.mxu0 0.0
    %192 = vmatpush.msra.mxu0 0.0
    %193 = vmatpush.msra.mxu0 0.0
    %194 = vmatpush.msra.mxu0 0.0
    %195 = vmatpush.msra.mxu0 0.0
    %v196 = vand.u32 %v41, 4294901760
    %197 = vmatpush.msra.mxu0 %v196
    %v198 = vand.u32 %v40, 4294901760
    %199 = vmatpush.msra.mxu0 %v198
    %v200 = vand.u32 %v44, 4294901760
    %201 = vmatmul.f32.gmra.mxu0 %v200
    %v202 = vpop.f32.mrf.mxu0
    %v203 = vadd.f32 %v180, %v202
    %204 = vdwg.mxu0
    %v205 = vld [vmem:[%s1] sm:$0xff]
    %v206 = vadd.f32 %v205, %v203
    %207 = vst [vmem:[#allocation5] sm:$0xff] %v206
    // Predicated region
    $region18: #{tpu_custom_call.1} parent=1 // pred_check
      _
    $region19: #{tpu_custom_call.1} parent=1 // pred_check_branch
      %209 = sbr.rel (0) target = $region21
    $region20: #{tpu_custom_call.1} parent=1 // pred_region
      %211 = vsyncadd [#allocation4], 0
      %s213 = sshll.u32 [#allocation5], 4
      %s214 = int_to_ptr.vmem [resolvable:$true] %s213
      %s215 = sshll.u32 %s3, 4
      %s216 = int_to_ptr.hbm [resolvable:$true] %s215
      %218 = dma.vmem_to_hbm [thread:$0]  %s214, 128, %s216, [#allocation4]
    $region21: #{tpu_custom_call.1} parent=1 // pred_fallthru
      _
    // Predicated region
    $region22: #{tpu_custom_call.1} parent=1 // pred_check
      _
    $region23: #{tpu_custom_call.1} parent=1 // pred_check_branch
      %220 = sbr.rel (0) target = $region25
    $region24: #{tpu_custom_call.1} parent=1 // pred_region
      %222 = dma.done [#allocation4], 128
    $region25: #{tpu_custom_call.1} parent=1 // pred_fallthru
      _
    %223 = vsyncpa [#allocation3], 1
    %224 = vsyncpa [#allocation4], 1

</llo_original>
